<compile_context>
chip_gen: v7x
topology: tpu7x:2x2x1
jax: 0.10.0
libtpu: 0.0.40
codegen_flags: <defaults>
</compile_context>

<pallas_src>
import jax
import jax.numpy as jnp
from jax.experimental import pallas as pl
from jax.experimental.pallas import tpu as pltpu


# --------------------------- fused dual-encoder + loss ------------------------
def _m2m_fused_kernel(scale_ref, tcnt_ref, lcnt_ref, temb_ref, lemb_ref,
                      tw_ref, lw_ref, tfeat_ref, lfeat_ref, loss_ref):
    # scale_ref : (1,) f32 in SMEM -- logit scale (already exponentiated)
    # tcnt/lcnt : (B, V) f32       -- masked token-count histograms per encoder
    # temb/lemb : (V, H) f32       -- embedding tables
    # tw/lw     : (H, D) f32       -- projection weights
    def encode(cnt_ref, table_ref, w_ref):
        # Embedding lookup + masked-SUM pooling fused into one MXU matmul.
        # (The masked-mean divisor is dropped: it cancels under L2 normalization.)
        pooled = jnp.dot(cnt_ref[...].astype(jnp.bfloat16),
                         table_ref[...].astype(jnp.bfloat16),
                         preferred_element_type=jnp.float32)            # (B, H)
        proj = jnp.dot(pooled.astype(jnp.bfloat16),
                       w_ref[...].astype(jnp.bfloat16),
                       preferred_element_type=jnp.float32)              # (B, D)
        inv_norm = jax.lax.rsqrt(
            jnp.sum(proj * proj, axis=-1, keepdims=True) + 1e-12)
        return proj * inv_norm                                          # (B, D), f32

    t = encode(tcnt_ref, temb_ref, tw_ref)                              # text features
    l = encode(lcnt_ref, lemb_ref, lw_ref)                              # label features
    tfeat_ref[...] = t
    lfeat_ref[...] = l

    # ---- symmetric contrastive (CLIP) loss: a single (B,B) logits matmul ----
    scale = scale_ref[0]                                                # scalar (SMEM)
    t_s = t * scale                                                     # fold scale once

    # logits = (scale * t) @ l^T  (NT contraction, no explicit transpose op)
    logits = jax.lax.dot_general(
        t_s.astype(jnp.bfloat16), l.astype(jnp.bfloat16),
        (((1,), (1,)), ((), ())),
        preferred_element_type=jnp.float32)                             # (B, B)

    B = t.shape[0]

    # text->label direction: log-sum-exp along the lane axis
    m_r = jnp.max(logits, axis=-1, keepdims=True)
    lse_r = m_r + jnp.log(jnp.sum(jnp.exp(logits - m_r), axis=-1, keepdims=True))
    # label->text direction: column LSE of the SAME matrix (no second matmul,
    # exactly consistent with the row direction)
    m_c = jnp.max(logits, axis=0, keepdims=True)
    lse_c = m_c + jnp.log(jnp.sum(jnp.exp(logits - m_c), axis=0, keepdims=True))

    # diagonal without any iota/eye: diag(logits) = sum((scale*t) * l, -1)
    diag = jnp.sum(t_s * l, axis=-1, keepdims=True)                     # (B, 1)

    total = (jnp.sum(lse_r, axis=0, keepdims=True)
             + jnp.sum(lse_c, axis=1, keepdims=True)
             - 2.0 * jnp.sum(diag, axis=0, keepdims=True))              # (1, 1)
    loss_ref[...] = 0.5 * total * (1.0 / B)


def m2m_fused(scale1, tcnt, lcnt, temb, lemb, tw, lw):
    """scale1: (1,) f32; tcnt/lcnt: (B,V) f32; temb/lemb: (V,H) f32; tw/lw: (H,D) f32."""
    B, V = tcnt.shape
    H = temb.shape[1]
    D = tw.shape[1]
    text_f, label_f, loss = pl.pallas_call(
        _m2m_fused_kernel,
        out_shape=(
            jax.ShapeDtypeStruct((B, D), jnp.float32),
            jax.ShapeDtypeStruct((B, D), jnp.float32),
            jax.ShapeDtypeStruct((1, 1), jnp.float32),
        ),
        grid=(1,),
        in_specs=[
            pl.BlockSpec(memory_space=pltpu.SMEM),              # logit scale scalar
            pl.BlockSpec((B, V), lambda i: (0, 0)),             # text counts
            pl.BlockSpec((B, V), lambda i: (0, 0)),             # label counts
            pl.BlockSpec((V, H), lambda i: (0, 0)),             # text embed table
            pl.BlockSpec((V, H), lambda i: (0, 0)),             # label embed table
            pl.BlockSpec((H, D), lambda i: (0, 0)),             # text proj
            pl.BlockSpec((H, D), lambda i: (0, 0)),             # label proj
        ],
        out_specs=(
            pl.BlockSpec((B, D), lambda i: (0, 0)),
            pl.BlockSpec((B, D), lambda i: (0, 0)),
            pl.BlockSpec((1, 1), lambda i: (0, 0)),
        ),
        compiler_params=pltpu.CompilerParams(
            dimension_semantics=("arbitrary",)),
    )(scale1, tcnt, lcnt, temb, lemb, tw, lw)
    return text_f, label_f, loss[0, 0]


# ------------------------------ module wrapper --------------------------------
def init_params(key, vocab=64, hidden=128, feat=128):
    k1, k2, k3, k4 = jax.random.split(key, 4)
    return {
        "text_embed": 0.02 * jax.random.normal(k1, (vocab, hidden), jnp.float32),
        "label_embed": 0.02 * jax.random.normal(k2, (vocab, hidden), jnp.float32),
        "text_proj": 0.02 * jax.random.normal(k3, (hidden, feat), jnp.float32),
        "label_proj": 0.02 * jax.random.normal(k4, (hidden, feat), jnp.float32),
        "log_logit_scale": jnp.asarray(jnp.log(1.0 / 0.07), jnp.float32),
    }


def _masked_counts(ids, mask, vocab):
    # Tiny index preprocessing (fuses in XLA): (B, V) masked token histogram so the
    # embedding lookup + masked-sum pooling become ONE MXU matmul inside the kernel.
    oh = jax.nn.one_hot(ids, vocab, dtype=jnp.float32)                  # (B, S, V)
    return jnp.einsum("bsv,bs->bv", oh, mask.astype(jnp.float32))       # (B, V)


def m2m_for_pretrain_forward(params, m2m_texts, m2m_labels,
                             output_features=None, return_dict=True):
    # mirror the torch module: drop 'labels' entries if present
    m2m_texts = {k: v for k, v in m2m_texts.items() if k != "labels"}
    m2m_labels = {k: v for k, v in m2m_labels.items() if k != "labels"}

    V = params["text_embed"].shape[0]
    tcnt = _masked_counts(m2m_texts["input_ids"], m2m_texts["attention_mask"], V)
    lcnt = _masked_counts(m2m_labels["input_ids"], m2m_labels["attention_mask"], V)

    logit_scale = jnp.exp(params["log_logit_scale"]).astype(jnp.float32)
    scale1 = jnp.reshape(logit_scale, (1,))

    text_features, label_features, loss = m2m_fused(
        scale1, tcnt, lcnt,
        params["text_embed"], params["label_embed"],
        params["text_proj"], params["label_proj"])

    return_features = ((text_features, label_features, logit_scale)
                       if output_features else (None, None, None))
    if not return_dict:
        # loss is always computed here, matching the torch branch with m2m_loss not None
        return (loss,) + return_features

    # the torch dict branch always carries the features, regardless of output_features
    return {
        "loss": loss,
        "text_features": text_features,
        "label_features": label_features,
        "logit_scale": logit_scale,
    }


if __name__ == "__main__":
    B, S, H, D, V = 8, 8, 128, 128, 64
    key = jax.random.PRNGKey(0)
    kp, kt, kl = jax.random.split(key, 3)

    params = init_params(kp, vocab=V, hidden=H, feat=D)

    text_ids = jax.random.randint(kt, (B, S), 0, V, dtype=jnp.int32)
    label_ids = jax.random.randint(kl, (B, S), 0, V, dtype=jnp.int32)
    # deterministic masks: texts keep first 6 tokens, labels keep first 4
    pos = jnp.arange(S)[None, :]
    text_mask = (pos < 6).astype(jnp.int32) * jnp.ones((B, 1), jnp.int32)
    label_mask = (pos < 4).astype(jnp.int32) * jnp.ones((B, 1), jnp.int32)

    m2m_texts = {"input_ids": text_ids, "attention_mask": text_mask,
                 "labels": text_ids}     # 'labels' gets popped, as in the torch module
    m2m_labels = {"input_ids": label_ids, "attention_mask": label_mask}

    out = m2m_for_pretrain_forward(params, m2m_texts, m2m_labels,
                                   output_features=True, return_dict=True)
    jax.block_until_ready(out["loss"])
    jax.block_until_ready(out["text_features"])
    jax.block_until_ready(out["label_features"])

    assert out["text_features"].shape == (B, D)
    assert out["label_features"].shape == (B, D)
    assert out["loss"].shape == ()
    assert bool(jnp.isfinite(out["loss"]))
    # features must be L2-normalized
    norms = jnp.linalg.norm(out["text_features"], axis=-1)
    assert bool(jnp.all(jnp.abs(norms - 1.0) < 1e-3))

    print("KERNEL_OK")
</pallas_src>

<mosaic_0001>
module attributes {stable_mosaic.version = 11 : i64} {
  func.func @_m2m_fused_kernel(%arg0: i32, %arg1: memref<1xf32, #tpu.memory_space<smem>>, %arg2: memref<8x64xf32, #tpu.memory_space<vmem>>, %arg3: memref<8x64xf32, #tpu.memory_space<vmem>>, %arg4: memref<64x128xf32, #tpu.memory_space<vmem>>, %arg5: memref<64x128xf32, #tpu.memory_space<vmem>>, %arg6: memref<128x128xf32, #tpu.memory_space<vmem>>, %arg7: memref<128x128xf32, #tpu.memory_space<vmem>>, %arg8: memref<8x128xf32, #tpu.memory_space<vmem>>, %arg9: memref<8x128xf32, #tpu.memory_space<vmem>>, %arg10: memref<1x1xf32, #tpu.memory_space<vmem>>) attributes {dimension_semantics = [#tpu.dimension_semantics<arbitrary>], iteration_bounds = array<i64: 1>, scalar_prefetch = 0 : i64, scratch_operands = 0 : i64, tpu.core_type = #tpu.core_type<tc>, window_params = [{transform_indices = @transform_0, window_bounds = array<i64: 1>}, {pipeline_mode = #tpu.pipeline_mode<synchronous>, transform_indices = @transform_1, window_bounds = array<i64: 8, 64>}, {pipeline_mode = #tpu.pipeline_mode<synchronous>, transform_indices = @transform_2, window_bounds = array<i64: 8, 64>}, {pipeline_mode = #tpu.pipeline_mode<synchronous>, transform_indices = @transform_3, window_bounds = array<i64: 64, 128>}, {pipeline_mode = #tpu.pipeline_mode<synchronous>, transform_indices = @transform_4, window_bounds = array<i64: 64, 128>}, {pipeline_mode = #tpu.pipeline_mode<synchronous>, transform_indices = @transform_5, window_bounds = array<i64: 128, 128>}, {pipeline_mode = #tpu.pipeline_mode<synchronous>, transform_indices = @transform_6, window_bounds = array<i64: 128, 128>}, {pipeline_mode = #tpu.pipeline_mode<synchronous>, transform_indices = @transform_7, window_bounds = array<i64: 8, 128>}, {pipeline_mode = #tpu.pipeline_mode<synchronous>, transform_indices = @transform_8, window_bounds = array<i64: 8, 128>}, {pipeline_mode = #tpu.pipeline_mode<synchronous>, transform_indices = @transform_9, window_bounds = array<i64: 1, 1>}]} {
    %c0 = arith.constant 0 : index
    %c0_0 = arith.constant 0 : index
    %0 = vector.load %arg2[%c0, %c0_0] : memref<8x64xf32, #tpu.memory_space<vmem>>, vector<8x64xf32>
    %1 = arith.truncf %0 : vector<8x64xf32> to vector<8x64xbf16>
    %c0_1 = arith.constant 0 : index
    %c0_2 = arith.constant 0 : index
    %2 = vector.load %arg4[%c0_1, %c0_2] : memref<64x128xf32, #tpu.memory_space<vmem>>, vector<64x128xf32>
    %3 = arith.truncf %2 : vector<64x128xf32> to vector<64x128xbf16>
    %cst = arith.constant dense<0.000000e+00> : vector<8x128xf32>
    %4 = tpu.matmul %1, %3, %cst {dimension_numbers = #tpu.dot_dimension_numbers<[1], [0], [0], [1], [0, 0, 1, 1], [], []>} : vector<8x64xbf16>, vector<64x128xbf16>, vector<8x128xf32> -> vector<8x128xf32>
    %5 = arith.truncf %4 : vector<8x128xf32> to vector<8x128xbf16>
    %c0_3 = arith.constant 0 : index
    %c0_4 = arith.constant 0 : index
    %6 = vector.load %arg6[%c0_3, %c0_4] : memref<128x128xf32, #tpu.memory_space<vmem>>, vector<128x128xf32>
    %7 = arith.truncf %6 : vector<128x128xf32> to vector<128x128xbf16>
    %cst_5 = arith.constant dense<0.000000e+00> : vector<8x128xf32>
    %8 = tpu.matmul %5, %7, %cst_5 {dimension_numbers = #tpu.dot_dimension_numbers<[1], [0], [0], [1], [0, 0, 1, 1], [], []>} : vector<8x128xbf16>, vector<128x128xbf16>, vector<8x128xf32> -> vector<8x128xf32>
    %9 = arith.mulf %8, %8 : vector<8x128xf32>
    %cst_6 = arith.constant dense<0.000000e+00> : vector<8xf32>
    %10 = vector.multi_reduction <add>, %9, %cst_6 [1] : vector<8x128xf32> to vector<8xf32>
    %11 = vector.shape_cast %10 : vector<8xf32> to vector<8x1xf32>
    %cst_7 = arith.constant 9.99999996E-13 : f32
    %12 = vector.broadcast %cst_7 : f32 to vector<8x1xf32>
    %13 = arith.addf %11, %12 : vector<8x1xf32>
    %14 = math.rsqrt %13 : vector<8x1xf32>
    %15 = vector.broadcast %14 : vector<8x1xf32> to vector<8x128xf32>
    %16 = arith.mulf %8, %15 : vector<8x128xf32>
    %c0_8 = arith.constant 0 : index
    %c0_9 = arith.constant 0 : index
    %17 = vector.load %arg3[%c0_8, %c0_9] : memref<8x64xf32, #tpu.memory_space<vmem>>, vector<8x64xf32>
    %18 = arith.truncf %17 : vector<8x64xf32> to vector<8x64xbf16>
    %c0_10 = arith.constant 0 : index
    %c0_11 = arith.constant 0 : index
    %19 = vector.load %arg5[%c0_10, %c0_11] : memref<64x128xf32, #tpu.memory_space<vmem>>, vector<64x128xf32>
    %20 = arith.truncf %19 : vector<64x128xf32> to vector<64x128xbf16>
    %cst_12 = arith.constant dense<0.000000e+00> : vector<8x128xf32>
    %21 = tpu.matmul %18, %20, %cst_12 {dimension_numbers = #tpu.dot_dimension_numbers<[1], [0], [0], [1], [0, 0, 1, 1], [], []>} : vector<8x64xbf16>, vector<64x128xbf16>, vector<8x128xf32> -> vector<8x128xf32>
    %22 = arith.truncf %21 : vector<8x128xf32> to vector<8x128xbf16>
    %c0_13 = arith.constant 0 : index
    %c0_14 = arith.constant 0 : index
    %23 = vector.load %arg7[%c0_13, %c0_14] : memref<128x128xf32, #tpu.memory_space<vmem>>, vector<128x128xf32>
    %24 = arith.truncf %23 : vector<128x128xf32> to vector<128x128xbf16>
    %cst_15 = arith.constant dense<0.000000e+00> : vector<8x128xf32>
    %25 = tpu.matmul %22, %24, %cst_15 {dimension_numbers = #tpu.dot_dimension_numbers<[1], [0], [0], [1], [0, 0, 1, 1], [], []>} : vector<8x128xbf16>, vector<128x128xbf16>, vector<8x128xf32> -> vector<8x128xf32>
    %26 = arith.mulf %25, %25 : vector<8x128xf32>
    %cst_16 = arith.constant dense<0.000000e+00> : vector<8xf32>
    %27 = vector.multi_reduction <add>, %26, %cst_16 [1] : vector<8x128xf32> to vector<8xf32>
    %28 = vector.shape_cast %27 : vector<8xf32> to vector<8x1xf32>
    %cst_17 = arith.constant 9.99999996E-13 : f32
    %29 = vector.broadcast %cst_17 : f32 to vector<8x1xf32>
    %30 = arith.addf %28, %29 : vector<8x1xf32>
    %31 = math.rsqrt %30 : vector<8x1xf32>
    %32 = vector.broadcast %31 : vector<8x1xf32> to vector<8x128xf32>
    %33 = arith.mulf %25, %32 : vector<8x128xf32>
    %c0_18 = arith.constant 0 : index
    %c0_19 = arith.constant 0 : index
    %34 = vector.load %arg8[%c0_18, %c0_19] : memref<8x128xf32, #tpu.memory_space<vmem>>, vector<8x128xf32>
    tpu.vector_store %arg8[%c0_18, %c0_19], %16 {strides = array<i32>} : memref<8x128xf32, #tpu.memory_space<vmem>>, vector<8x128xf32>,
    %c0_20 = arith.constant 0 : index
    %c0_21 = arith.constant 0 : index
    %35 = vector.load %arg9[%c0_20, %c0_21] : memref<8x128xf32, #tpu.memory_space<vmem>>, vector<8x128xf32>
    tpu.vector_store %arg9[%c0_20, %c0_21], %33 {strides = array<i32>} : memref<8x128xf32, #tpu.memory_space<vmem>>, vector<8x128xf32>,
    %c0_22 = arith.constant 0 : index
    %36 = memref.load %arg1[%c0_22] : memref<1xf32, #tpu.memory_space<smem>>
    %37 = vector.broadcast %36 : f32 to vector<8x128xf32>
    %38 = arith.mulf %16, %37 : vector<8x128xf32>
    %39 = arith.truncf %38 : vector<8x128xf32> to vector<8x128xbf16>
    %40 = arith.truncf %33 : vector<8x128xf32> to vector<8x128xbf16>
    %cst_23 = arith.constant dense<0.000000e+00> : vector<8x8xf32>
    %41 = tpu.matmul %39, %40, %cst_23 {dimension_numbers = #tpu.dot_dimension_numbers<[1], [1], [0], [0], [0, 0, 1, 0], [], []>} : vector<8x128xbf16>, vector<8x128xbf16>, vector<8x8xf32> -> vector<8x8xf32>
    %cst_24 = arith.constant dense<0xFF800000> : vector<8xf32>
    %42 = vector.multi_reduction <maximumf>, %41, %cst_24 [1] : vector<8x8xf32> to vector<8xf32>
    %43 = vector.shape_cast %42 : vector<8xf32> to vector<8x1xf32>
    %44 = vector.broadcast %43 : vector<8x1xf32> to vector<8x8xf32>
    %45 = arith.subf %41, %44 : vector<8x8xf32>
    %46 = math.exp %45 : vector<8x8xf32>
    %cst_25 = arith.constant dense<0.000000e+00> : vector<8xf32>
    %47 = vector.multi_reduction <add>, %46, %cst_25 [1] : vector<8x8xf32> to vector<8xf32>
    %48 = vector.shape_cast %47 : vector<8xf32> to vector<8x1xf32>
    %49 = math.log %48 : vector<8x1xf32>
    %50 = arith.addf %43, %49 : vector<8x1xf32>
    %cst_26 = arith.constant dense<0xFF800000> : vector<8xf32>
    %51 = vector.multi_reduction <maximumf>, %41, %cst_26 [0] : vector<8x8xf32> to vector<8xf32>
    %52 = vector.shape_cast %51 : vector<8xf32> to vector<1x8xf32>
    %53 = vector.broadcast %52 : vector<1x8xf32> to vector<8x8xf32>
    %54 = arith.subf %41, %53 : vector<8x8xf32>
    %55 = math.exp %54 : vector<8x8xf32>
    %cst_27 = arith.constant dense<0.000000e+00> : vector<8xf32>
    %56 = vector.multi_reduction <add>, %55, %cst_27 [0] : vector<8x8xf32> to vector<8xf32>
    %57 = vector.shape_cast %56 : vector<8xf32> to vector<1x8xf32>
    %58 = math.log %57 : vector<1x8xf32>
    %59 = arith.addf %52, %58 : vector<1x8xf32>
    %60 = arith.mulf %38, %33 : vector<8x128xf32>
    %cst_28 = arith.constant dense<0.000000e+00> : vector<8xf32>
    %61 = vector.multi_reduction <add>, %60, %cst_28 [1] : vector<8x128xf32> to vector<8xf32>
    %62 = vector.shape_cast %61 : vector<8xf32> to vector<8x1xf32>
    %cst_29 = arith.constant dense<0.000000e+00> : vector<1xf32>
    %63 = vector.multi_reduction <add>, %50, %cst_29 [0] : vector<8x1xf32> to vector<1xf32>
    %64 = vector.shape_cast %63 : vector<1xf32> to vector<1x1xf32>
    %cst_30 = arith.constant dense<0.000000e+00> : vector<1xf32>
    %65 = vector.multi_reduction <add>, %59, %cst_30 [1] : vector<1x8xf32> to vector<1xf32>
    %66 = vector.shape_cast %65 : vector<1xf32> to vector<1x1xf32>
    %67 = arith.addf %64, %66 : vector<1x1xf32>
    %cst_31 = arith.constant dense<0.000000e+00> : vector<1xf32>
    %68 = vector.multi_reduction <add>, %62, %cst_31 [0] : vector<8x1xf32> to vector<1xf32>
    %69 = vector.shape_cast %68 : vector<1xf32> to vector<1x1xf32>
    %cst_32 = arith.constant 2.000000e+00 : f32
    %70 = vector.broadcast %cst_32 : f32 to vector<1x1xf32>
    %71 = arith.mulf %70, %69 : vector<1x1xf32>
    %72 = arith.subf %67, %71 : vector<1x1xf32>
    %cst_33 = arith.constant 5.000000e-01 : f32
    %73 = vector.broadcast %cst_33 : f32 to vector<1x1xf32>
    %74 = arith.mulf %73, %72 : vector<1x1xf32>
    %cst_34 = arith.constant 1.250000e-01 : f32
    %75 = vector.broadcast %cst_34 : f32 to vector<1x1xf32>
    %76 = arith.mulf %74, %75 : vector<1x1xf32>
    %c0_35 = arith.constant 0 : index
    %c0_36 = arith.constant 0 : index
    %77 = vector.load %arg10[%c0_35, %c0_36] : memref<1x1xf32, #tpu.memory_space<vmem>>, vector<1x1xf32>
    tpu.vector_store %arg10[%c0_35, %c0_36], %76 {strides = array<i32>} : memref<1x1xf32, #tpu.memory_space<vmem>>, vector<1x1xf32>,
    return
  }
  func.func @transform_0(%arg0: i32) -> i32 {
    %c0_i32 = arith.constant 0 : i32
    %c0_i32_0 = arith.constant 0 : i32
    return %c0_i32 : i32
  }
  func.func @transform_1(%arg0: i32) -> (i32, i32) {
    %c0_i32 = arith.constant 0 : i32
    %c0_i32_0 = arith.constant 0 : i32
    %c0_i32_1 = arith.constant 0 : i32
    return %c0_i32, %c0_i32_0 : i32, i32
  }
  func.func @transform_2(%arg0: i32) -> (i32, i32) {
    %c0_i32 = arith.constant 0 : i32
    %c0_i32_0 = arith.constant 0 : i32
    %c0_i32_1 = arith.constant 0 : i32
    return %c0_i32, %c0_i32_0 : i32, i32
  }
  func.func @transform_3(%arg0: i32) -> (i32, i32) {
    %c0_i32 = arith.constant 0 : i32
    %c0_i32_0 = arith.constant 0 : i32
    %c0_i32_1 = arith.constant 0 : i32
    return %c0_i32, %c0_i32_0 : i32, i32
  }
  func.func @transform_4(%arg0: i32) -> (i32, i32) {
    %c0_i32 = arith.constant 0 : i32
    %c0_i32_0 = arith.constant 0 : i32
    %c0_i32_1 = arith.constant 0 : i32
    return %c0_i32, %c0_i32_0 : i32, i32
  }
  func.func @transform_5(%arg0: i32) -> (i32, i32) {
    %c0_i32 = arith.constant 0 : i32
    %c0_i32_0 = arith.constant 0 : i32
    %c0_i32_1 = arith.constant 0 : i32
    return %c0_i32, %c0_i32_0 : i32, i32
  }
  func.func @transform_6(%arg0: i32) -> (i32, i32) {
    %c0_i32 = arith.constant 0 : i32
    %c0_i32_0 = arith.constant 0 : i32
    %c0_i32_1 = arith.constant 0 : i32
    return %c0_i32, %c0_i32_0 : i32, i32
  }
  func.func @transform_7(%arg0: i32) -> (i32, i32) {
    %c0_i32 = arith.constant 0 : i32
    %c0_i32_0 = arith.constant 0 : i32
    %c0_i32_1 = arith.constant 0 : i32
    return %c0_i32, %c0_i32_0 : i32, i32
  }
  func.func @transform_8(%arg0: i32) -> (i32, i32) {
    %c0_i32 = arith.constant 0 : i32
    %c0_i32_0 = arith.constant 0 : i32
    %c0_i32_1 = arith.constant 0 : i32
    return %c0_i32, %c0_i32_0 : i32, i32
  }
  func.func @transform_9(%arg0: i32) -> (i32, i32) {
    %c0_i32 = arith.constant 0 : i32
    %c0_i32_0 = arith.constant 0 : i32
    %c0_i32_1 = arith.constant 0 : i32
    return %c0_i32, %c0_i32_0 : i32, i32
  }
}

</mosaic_0001>

<llo_original>
// kernel: tpu_custom_call.1
$region0: #{tpu_custom_call.1}
  #allocation0 [shape = 'u32[]', space=smem, size = 0x4, offset = 0x4, fixed_abs, tag = 'smem constant byte address 0x4 - core index']
  #allocation1 [shape = 'u32[144,128]{1,0:T(1,128)}', space=vmem, size = 0x12000, scoped, tag = 'internal scratch']
  #allocation2 [shape = 'f32[1]{0:T(128)S(6)}', space=smem, size = 0x200, scoped, tag = 'scoped memory for tpu_custom_call.1']
  %s0 = inlined_call_operand.<no memory space> [shape: f32[1], index: 0, kind: input, shape index: {}]
  %s1 = inlined_call_operand.hbm [shape: f32[8,64], index: 1, kind: input, shape index: {}]
  %s2 = inlined_call_operand.hbm [shape: f32[8,64], index: 2, kind: input, shape index: {}]
  %s3 = inlined_call_operand.hbm [shape: f32[64,128], index: 3, kind: input, shape index: {}]
  %s4 = inlined_call_operand.hbm [shape: f32[64,128], index: 4, kind: input, shape index: {}]
  %s5 = inlined_call_operand.hbm [shape: f32[128,128], index: 5, kind: input, shape index: {}]
  %s6 = inlined_call_operand.hbm [shape: f32[128,128], index: 6, kind: input, shape index: {}]
  %s7 = inlined_call_operand.hbm [shape: f32[8,128], index: 7, kind: output, shape index: {0}]
  %s8 = inlined_call_operand.hbm [shape: f32[8,128], index: 8, kind: output, shape index: {1}]
  %s9 = inlined_call_operand.hbm [shape: f32[1,1], index: 9, kind: output, shape index: {2}]
  %10 = xla_tuple %s7, %s8, %s9
  %s11 = sld [smem:[#allocation0]]
  $region78: #{tpu_custom_call.1} parent=0
    _
  %s13 = ssub.s32 1, %s11
  %s14 = scalar_select 0, %s13, %s11
  %15 = sst [smem:[#allocation2]] %s0
  $region1: #{tpu_custom_call.1} parent=0
    #allocation3 [shape = 'u8[4096]{0}', space=vmem, size = 0x1000, scoped, tag = 'input window, operand 1, single buffered']
    #allocation4 [shape = 's32[1]{0}', space=sflag, size = 0x4, scoped, tag = 'scoped memory for tpu_custom_call.1']
    #allocation5 [shape = 's32[1]{0}', space=sflag, size = 0x4, scoped, tag = 'scoped memory for tpu_custom_call.1']
    #allocation6 [shape = 'u8[4096]{0}', space=vmem, size = 0x1000, scoped, tag = 'input window, operand 2, single buffered']
    #allocation7 [shape = 's32[1]{0}', space=sflag, size = 0x4, scoped, tag = 'scoped memory for tpu_custom_call.1']
    #allocation8 [shape = 'u8[32768]{0}', space=vmem, size = 0x8000, scoped, tag = 'input window, operand 3, single buffered']
    #allocation9 [shape = 'u8[32768]{0}', space=vmem, size = 0x8000, scoped, tag = 'input window, operand 4, single buffered']
    #allocation10 [shape = 's32[1]{0}', space=sflag, size = 0x4, scoped, tag = 'scoped memory for tpu_custom_call.1']
    #allocation11 [shape = 'u8[65536]{0}', space=vmem, size = 0x10000, scoped, tag = 'input window, operand 5, single buffered']
    #allocation12 [shape = 'u8[65536]{0}', space=vmem, size = 0x10000, scoped, tag = 'input window, operand 6, single buffered']
    #allocation13 [shape = 's32[1]{0}', space=sflag, size = 0x4, scoped, tag = 'scoped memory for tpu_custom_call.1']
    #allocation14 [shape = 'u8[4096]{0}', space=vmem, size = 0x1000, scoped, tag = 'output window, operand 0, single buffered']
    #allocation15 [shape = 'u8[4096]{0}', space=vmem, size = 0x1000, scoped, tag = 'output window, operand 1, single buffered']
    #allocation16 [shape = 's32[1]{0}', space=sflag, size = 0x4, scoped, tag = 'scoped memory for tpu_custom_call.1']
    #allocation17 [shape = 'u8[512]{0}', space=vmem, size = 0x400, scoped, tag = 'output window, operand 2, single buffered']
    %16 = vsyncpa [#allocation4], 0
    %17 = vsyncpa [#allocation7], 0
    %18 = vsyncpa [#allocation10], 0
    %19 = vsyncpa [#allocation13], 0
    %20 = vsyncpa [#allocation5], 0
    %21 = vsyncpa [#allocation16], 0
    // Predicated region
    $region2: #{tpu_custom_call.1} parent=1 // pred_check
      _
    $region3: #{tpu_custom_call.1} parent=1 // pred_check_branch
      %23 = sbr.rel (0) target = $region5
    $region4: #{tpu_custom_call.1} parent=1 // pred_region
      _
    $region5: #{tpu_custom_call.1} parent=1 // pred_fallthru
      _
    // Predicated region
    $region6: #{tpu_custom_call.1} parent=1 // pred_check
      _
    $region7: #{tpu_custom_call.1} parent=1 // pred_check_branch
      %25 = sbr.rel (0) target = $region9
    $region8: #{tpu_custom_call.1} parent=1 // pred_region
      %s27 = ssub.s32 128, 128
      %28 = vsyncadd [#allocation4], %s27
      %s30 = sshll.u32 [#allocation3], 4
      %s31 = int_to_ptr.vmem [resolvable:$true] %s30
      %33 = dma.hbm_to_vmem [thread:$0]  %s1, 128, %s31, [#allocation4]
    $region9: #{tpu_custom_call.1} parent=1 // pred_fallthru
      _
    // Predicated region
    $region10: #{tpu_custom_call.1} parent=1 // pred_check
      _
    $region11: #{tpu_custom_call.1} parent=1 // pred_check_branch
      %35 = sbr.rel (0) target = $region13
    $region12: #{tpu_custom_call.1} parent=1 // pred_region
      %s37 = ssub.s32 128, 128
      %38 = vsyncadd [#allocation7], %s37
      %s40 = sshll.u32 [#allocation6], 4
      %s41 = int_to_ptr.vmem [resolvable:$true] %s40
      %43 = dma.hbm_to_vmem [thread:$0]  %s2, 128, %s41, [#allocation7]
    $region13: #{tpu_custom_call.1} parent=1 // pred_fallthru
      _
    // Predicated region
    $region14: #{tpu_custom_call.1} parent=1 // pred_check
      _
    $region15: #{tpu_custom_call.1} parent=1 // pred_check_branch
      %45 = sbr.rel (0) target = $region17
    $region16: #{tpu_custom_call.1} parent=1 // pred_region
      %s47 = ssub.s32 1024, 1024
      %48 = vsyncadd [#allocation7], %s47
      %s49 = sshll.u32 [#allocation8], 4
      %s50 = int_to_ptr.vmem [resolvable:$true] %s49
      %55 = dma.hbm_to_vmem [thread:$0]  %s3, 1024, %s50, [#allocation7], 128, 128, 8
    $region17: #{tpu_custom_call.1} parent=1 // pred_fallthru
      _
    // Predicated region
    $region18: #{tpu_custom_call.1} parent=1 // pred_check
      _
    $region19: #{tpu_custom_call.1} parent=1 // pred_check_branch
      %57 = sbr.rel (0) target = $region21
    $region20: #{tpu_custom_call.1} parent=1 // pred_region
      %s59 = ssub.s32 1024, 1024
      %60 = vsyncadd [#allocation10], %s59
      %s61 = sshll.u32 [#allocation9], 4
      %s62 = int_to_ptr.vmem [resolvable:$true] %s61
      %67 = dma.hbm_to_vmem [thread:$0]  %s4, 1024, %s62, [#allocation10], 128, 128, 8
    $region21: #{tpu_custom_call.1} parent=1 // pred_fallthru
      _
    // Predicated region
    $region22: #{tpu_custom_call.1} parent=1 // pred_check
      _
    $region23: #{tpu_custom_call.1} parent=1 // pred_check_branch
      %69 = sbr.rel (0) target = $region25
    $region24: #{tpu_custom_call.1} parent=1 // pred_region
      %s71 = ssub.s32 2048, 2048
      %72 = vsyncadd [#allocation10], %s71
      %s73 = sshll.u32 [#allocation11], 4
      %s74 = int_to_ptr.vmem [resolvable:$true] %s73
      %79 = dma.hbm_to_vmem [thread:$0]  %s5, 2048, %s74, [#allocation10], 128, 128, 8
    $region25: #{tpu_custom_call.1} parent=1 // pred_fallthru
      _
    // Predicated region
    $region26: #{tpu_custom_call.1} parent=1 // pred_check
      _
    $region27: #{tpu_custom_call.1} parent=1 // pred_check_branch
      %81 = sbr.rel (0) target = $region29
    $region28: #{tpu_custom_call.1} parent=1 // pred_region
      %s83 = ssub.s32 2048, 2048
      %84 = vsyncadd [#allocation13], %s83
      %s85 = sshll.u32 [#allocation12], 4
      %s86 = int_to_ptr.vmem [resolvable:$true] %s85
      %91 = dma.hbm_to_vmem [thread:$0]  %s6, 2048, %s86, [#allocation13], 128, 128, 8
    $region29: #{tpu_custom_call.1} parent=1 // pred_fallthru
      _
    // Predicated region
    $region30: #{tpu_custom_call.1} parent=1 // pred_check
      _
    $region31: #{tpu_custom_call.1} parent=1 // pred_check_branch
      %93 = sbr.rel (0) target = $region33
    $region32: #{tpu_custom_call.1} parent=1 // pred_region
      %94 = dma.done [#allocation4], 128
    $region33: #{tpu_custom_call.1} parent=1 // pred_fallthru
      _
    // Predicated region
    $region34: #{tpu_custom_call.1} parent=1 // pred_check
      _
    $region35: #{tpu_custom_call.1} parent=1 // pred_check_branch
      %96 = sbr.rel (0) target = $region37
    $region36: #{tpu_custom_call.1} parent=1 // pred_region
      %97 = dma.done [#allocation7], 128
    $region37: #{tpu_custom_call.1} parent=1 // pred_fallthru
      _
    // Predicated region
    $region38: #{tpu_custom_call.1} parent=1 // pred_check
      _
    $region39: #{tpu_custom_call.1} parent=1 // pred_check_branch
      %99 = sbr.rel (0) target = $region41
    $region40: #{tpu_custom_call.1} parent=1 // pred_region
      %100 = dma.done [#allocation7], 1024
    $region41: #{tpu_custom_call.1} parent=1 // pred_fallthru
      _
    // Predicated region
    $region42: #{tpu_custom_call.1} parent=1 // pred_check
      _
    $region43: #{tpu_custom_call.1} parent=1 // pred_check_branch
      %102 = sbr.rel (0) target = $region45
    $region44: #{tpu_custom_call.1} parent=1 // pred_region
      %103 = dma.done [#allocation10], 1024
    $region45: #{tpu_custom_call.1} parent=1 // pred_fallthru
      _
    // Predicated region
    $region46: #{tpu_custom_call.1} parent=1 // pred_check
      _
    $region47: #{tpu_custom_call.1} parent=1 // pred_check_branch
      %105 = sbr.rel (0) target = $region49
    $region48: #{tpu_custom_call.1} parent=1 // pred_region
      %106 = dma.done [#allocation10], 2048
    $region49: #{tpu_custom_call.1} parent=1 // pred_fallthru
      _
    // Predicated region
    $region50: #{tpu_custom_call.1} parent=1 // pred_check
      _
    $region51: #{tpu_custom_call.1} parent=1 // pred_check_branch
      %108 = sbr.rel (0) target = $region53
    $region52: #{tpu_custom_call.1} parent=1 // pred_region
      %109 = dma.done [#allocation13], 2048
    $region53: #{tpu_custom_call.1} parent=1 // pred_fallthru
      _
    %v111 = vld [vmem:[#allocation3] sm:$0xff]
    %v112 = vpack.c.bf16 %v111, %v111
    %v113 = vld [vmem:[#allocation8] sm:$0xff]
    %v114 = vld [vmem:[#allocation8 + $0x8] sm:$0xff]
    %v115 = vld [vmem:[#allocation8 + $0x10] sm:$0xff]
    %v116 = vld [vmem:[#allocation8 + $0x18] sm:$0xff]
    %v117 = vld [vmem:[#allocation8 + $0x20] sm:$0xff]
    %v118 = vld [vmem:[#allocation8 + $0x28] sm:$0xff]
    %v119 = vld [vmem:[#allocation8 + $0x30] sm:$0xff]
    %v120 = vld [vmem:[#allocation8 + $0x38] sm:$0xff]
    %v121 = vpack.c.bf16 %v114, %v113
    %v122 = vpack.c.bf16 %v116, %v115
    %v123 = vpack.c.bf16 %v118, %v117
    %v124 = vpack.c.bf16 %v120, %v119
    %vm125 = vcmask 523264
    %v127 = vsel %vm125, %v112, 0
    %129 = vmatprep.subr.bf16.mxu0 0
    %130 = vmatpush1.bf16.msra.mxu0 %v121
    %131 = vmatprep.subr.bf16.mxu0 0
    %132 = vmatpush1.bf16.msra.mxu0 %v122
    %133 = vmatprep.subr.bf16.mxu0 0
    %134 = vmatpush1.bf16.msra.mxu0 %v123
    %135 = vmatprep.subr.bf16.mxu0 0
    %136 = vmatpush1.bf16.msra.mxu0 %v124
    %137 = vmatprep.subr.bf16.mxu0 0
    %138 = vmatpush1.bf16.msra.mxu0 0
    %139 = vmatprep.subr.bf16.mxu0 0
    %140 = vmatpush1.bf16.msra.mxu0 0
    %141 = vmatprep.subr.bf16.mxu0 0
    %142 = vmatpush1.bf16.msra.mxu0 0
    %143 = vmatprep.subr.bf16.mxu0 0
    %144 = vmatpush1.bf16.msra.mxu0 0
    %145 = vmatprep.subr.bf16.mxu0 0
    %146 = vmatpush1.bf16.msra.mxu0 0
    %147 = vmatprep.subr.bf16.mxu0 0
    %148 = vmatpush1.bf16.msra.mxu0 0
    %149 = vmatprep.subr.bf16.mxu0 0
    %150 = vmatpush1.bf16.msra.mxu0 0
    %151 = vmatprep.subr.bf16.mxu0 0
    %152 = vmatpush1.bf16.msra.mxu0 0
    %153 = vmatprep.subr.bf16.mxu0 0
    %154 = vmatpush1.bf16.msra.mxu0 0
    %155 = vmatprep.subr.bf16.mxu0 0
    %156 = vmatpush1.bf16.msra.mxu0 0
    %157 = vmatprep.subr.bf16.mxu0 0
    %158 = vmatpush1.bf16.msra.mxu0 0
    %159 = vmatprep.subr.bf16.mxu0 0
    %160 = vmatpush1.bf16.msra.mxu0 0
    %161 = vmatprep.mubr.bf16.mxu0 0
    %162 = vmatmul.mubr.bf16.gmra.mrb[0].mxu0 %v127
    %v163 = vpop.f32.mrb[0].mxu0
    %v164 = vadd.f32 0.0, %v163
    %v165 = vpop.f32.mrb[0].mxu0
    %v166 = vpop.f32.mrb[0].mxu0
    %v167 = vpop.f32.mrb[0].mxu0
    %168 = vdwg.mxu0
    %v169 = vpack.c.bf16 %v164, %v164
    %v170 = vld [vmem:[#allocation11] sm:$0xff]
    %v171 = vld [vmem:[#allocation11 + $0x8] sm:$0xff]
    %v172 = vld [vmem:[#allocation11 + $0x10] sm:$0xff]
    %v173 = vld [vmem:[#allocation11 + $0x18] sm:$0xff]
    %v174 = vld [vmem:[#allocation11 + $0x20] sm:$0xff]
    %v175 = vld [vmem:[#allocation11 + $0x28] sm:$0xff]
    %v176 = vld [vmem:[#allocation11 + $0x30] sm:$0xff]
    %v177 = vld [vmem:[#allocation11 + $0x38] sm:$0xff]
    %v178 = vld [vmem:[#allocation11 + $0x40] sm:$0xff]
    %v179 = vld [vmem:[#allocation11 + $0x48] sm:$0xff]
    %v180 = vld [vmem:[#allocation11 + $0x50] sm:$0xff]
    %v181 = vld [vmem:[#allocation11 + $0x58] sm:$0xff]
    %v182 = vld [vmem:[#allocation11 + $0x60] sm:$0xff]
    %v183 = vld [vmem:[#allocation11 + $0x68] sm:$0xff]
    %v184 = vld [vmem:[#allocation11 + $0x70] sm:$0xff]
    %v185 = vld [vmem:[#allocation11 + $0x78] sm:$0xff]
    %v186 = vpack.c.bf16 %v171, %v170
    %v187 = vpack.c.bf16 %v173, %v172
    %v188 = vpack.c.bf16 %v175, %v174
    %v189 = vpack.c.bf16 %v177, %v176
    %v190 = vpack.c.bf16 %v179, %v178
    %v191 = vpack.c.bf16 %v181, %v180
    %v192 = vpack.c.bf16 %v183, %v182
    %v193 = vpack.c.bf16 %v185, %v184
    %194 = vmatprep.subr.bf16.mxu0 0
    %195 = vmatpush1.bf16.msra.mxu0 %v186
    %196 = vmatprep.subr.bf16.mxu0 0
    %197 = vmatpush1.bf16.msra.mxu0 %v187
    %198 = vmatprep.subr.bf16.mxu0 0
    %199 = vmatpush1.bf16.msra.mxu0 %v188
    %200 = vmatprep.subr.bf16.mxu0 0
    %201 = vmatpush1.bf16.msra.mxu0 %v189
    %202 = vmatprep.subr.bf16.mxu0 0
    %203 = vmatpush1.bf16.msra.mxu0 %v190
    %204 = vmatprep.subr.bf16.mxu0 0
    %205 = vmatpush1.bf16.msra.mxu0 %v191
    %206 = vmatprep.subr.bf16.mxu0 0
    %207 = vmatpush1.bf16.msra.mxu0 %v192
    %208 = vmatprep.subr.bf16.mxu0 0
    %209 = vmatpush1.bf16.msra.mxu0 %v193
    %210 = vmatprep.subr.bf16.mxu0 0
    %211 = vmatpush1.bf16.msra.mxu0 0
    %212 = vmatprep.subr.bf16.mxu0 0
    %213 = vmatpush1.bf16.msra.mxu0 0
    %214 = vmatprep.subr.bf16.mxu0 0
    %215 = vmatpush1.bf16.msra.mxu0 0
    %216 = vmatprep.subr.bf16.mxu0 0
    %217 = vmatpush1.bf16.msra.mxu0 0
    %218 = vmatprep.subr.bf16.mxu0 0
    %219 = vmatpush1.bf16.msra.mxu0 0
    %220 = vmatprep.subr.bf16.mxu0 0
    %221 = vmatpush1.bf16.msra.mxu0 0
    %222 = vmatprep.subr.bf16.mxu0 0
    %223 = vmatpush1.bf16.msra.mxu0 0
    %224 = vmatprep.subr.bf16.mxu0 0
    %225 = vmatpush1.bf16.msra.mxu0 0
    %226 = vmatprep.mubr.bf16.mxu0 0
    %227 = vmatmul.mubr.bf16.gmra.mrb[0].mxu0 %v169
    %v228 = vpop.f32.mrb[0].mxu0
    %v229 = vadd.f32 0.0, %v228
    %v230 = vpop.f32.mrb[0].mxu0
    %v231 = vpop.f32.mrb[0].mxu0
    %v232 = vpop.f32.mrb[0].mxu0
    %233 = vdwg.mxu0
    %v234 = vmul.f32 %v229, %v229
    %235 = vadd.xlane.f32.xlu0 %v234
    %v236 = vpop.xlane.xlu0 %235
    %v237 = vadd.f32 %v236, 1e-12
    %v238 = vrsqrt.pop %v237
    %v239 = vmul.f32 %v229, %v238
    %v240 = vld [vmem:[#allocation6] sm:$0xff]
    %v241 = vpack.c.bf16 %v240, %v240
    %v242 = vld [vmem:[#allocation9] sm:$0xff]
    %v243 = vld [vmem:[#allocation9 + $0x8] sm:$0xff]
    %v244 = vld [vmem:[#allocation9 + $0x10] sm:$0xff]
    %v245 = vld [vmem:[#allocation9 + $0x18] sm:$0xff]
    %v246 = vld [vmem:[#allocation9 + $0x20] sm:$0xff]
    %v247 = vld [vmem:[#allocation9 + $0x28] sm:$0xff]
    %v248 = vld [vmem:[#allocation9 + $0x30] sm:$0xff]
    %v249 = vld [vmem:[#allocation9 + $0x38] sm:$0xff]
    %v250 = vpack.c.bf16 %v243, %v242
    %v251 = vpack.c.bf16 %v245, %v244
    %v252 = vpack.c.bf16 %v247, %v246
    %v253 = vpack.c.bf16 %v249, %v248
    %v255 = vsel %vm125, %v241, 0
    %257 = vmatprep.subr.bf16.mxu0 0
    %258 = vmatpush1.bf16.msra.mxu0 %v250
    %259 = vmatprep.subr.bf16.mxu0 0
    %260 = vmatpush1.bf16.msra.mxu0 %v251
    %261 = vmatprep.subr.bf16.mxu0 0
    %262 = vmatpush1.bf16.msra.mxu0 %v252
    %263 = vmatprep.subr.bf16.mxu0 0
    %264 = vmatpush1.bf16.msra.mxu0 %v253
    %265 = vmatprep.subr.bf16.mxu0 0
    %266 = vmatpush1.bf16.msra.mxu0 0
    %267 = vmatprep.subr.bf16.mxu0 0
    %268 = vmatpush1.bf16.msra.mxu0 0
    %269 = vmatprep.subr.bf16.mxu0 0
    %270 = vmatpush1.bf16.msra.mxu0 0
    %271 = vmatprep.subr.bf16.mxu0 0
    %272 = vmatpush1.bf16.msra.mxu0 0
    %273 = vmatprep.subr.bf16.mxu0 0
    %274 = vmatpush1.bf16.msra.mxu0 0
    %275 = vmatprep.subr.bf16.mxu0 0
    %276 = vmatpush1.bf16.msra.mxu0 0
    %277 = vmatprep.subr.bf16.mxu0 0
    %278 = vmatpush1.bf16.msra.mxu0 0
    %279 = vmatprep.subr.bf16.mxu0 0
    %280 = vmatpush1.bf16.msra.mxu0 0
    %281 = vmatprep.subr.bf16.mxu0 0
    %282 = vmatpush1.bf16.msra.mxu0 0
    %283 = vmatprep.subr.bf16.mxu0 0
    %284 = vmatpush1.bf16.msra.mxu0 0
    %285 = vmatprep.subr.bf16.mxu0 0
    %286 = vmatpush1.bf16.msra.mxu0 0
    %287 = vmatprep.subr.bf16.mxu0 0
    %288 = vmatpush1.bf16.msra.mxu0 0
    %289 = vmatprep.mubr.bf16.mxu0 0
    %290 = vmatmul.mubr.bf16.gmra.mrb[0].mxu0 %v255
    %v291 = vpop.f32.mrb[0].mxu0
    %v292 = vadd.f32 0.0, %v291
    %v293 = vpop.f32.mrb[0].mxu0
    %v294 = vpop.f32.mrb[0].mxu0
    %v295 = vpop.f32.mrb[0].mxu0
    %296 = vdwg.mxu0
    %v297 = vpack.c.bf16 %v292, %v292
    %v298 = vld [vmem:[#allocation12] sm:$0xff]
    %v299 = vld [vmem:[#allocation12 + $0x8] sm:$0xff]
    %v300 = vld [vmem:[#allocation12 + $0x10] sm:$0xff]
    %v301 = vld [vmem:[#allocation12 + $0x18] sm:$0xff]
    %v302 = vld [vmem:[#allocation12 + $0x20] sm:$0xff]
    %v303 = vld [vmem:[#allocation12 + $0x28] sm:$0xff]
    %v304 = vld [vmem:[#allocation12 + $0x30] sm:$0xff]
    %v305 = vld [vmem:[#allocation12 + $0x38] sm:$0xff]
    %v306 = vld [vmem:[#allocation12 + $0x40] sm:$0xff]
    %v307 = vld [vmem:[#allocation12 + $0x48] sm:$0xff]
    %v308 = vld [vmem:[#allocation12 + $0x50] sm:$0xff]
    %v309 = vld [vmem:[#allocation12 + $0x58] sm:$0xff]
    %v310 = vld [vmem:[#allocation12 + $0x60] sm:$0xff]
    %v311 = vld [vmem:[#allocation12 + $0x68] sm:$0xff]
    %v312 = vld [vmem:[#allocation12 + $0x70] sm:$0xff]
    %v313 = vld [vmem:[#allocation12 + $0x78] sm:$0xff]
    %v314 = vpack.c.bf16 %v299, %v298
    %v315 = vpack.c.bf16 %v301, %v300
    %v316 = vpack.c.bf16 %v303, %v302
    %v317 = vpack.c.bf16 %v305, %v304
    %v318 = vpack.c.bf16 %v307, %v306
    %v319 = vpack.c.bf16 %v309, %v308
    %v320 = vpack.c.bf16 %v311, %v310
    %v321 = vpack.c.bf16 %v313, %v312
    %322 = vmatprep.subr.bf16.mxu0 0
    %323 = vmatpush1.bf16.msra.mxu0 %v314
    %324 = vmatprep.subr.bf16.mxu0 0
    %325 = vmatpush1.bf16.msra.mxu0 %v315
    %326 = vmatprep.subr.bf16.mxu0 0
    %327 = vmatpush1.bf16.msra.mxu0 %v316
    %328 = vmatprep.subr.bf16.mxu0 0
    %329 = vmatpush1.bf16.msra.mxu0 %v317
    %330 = vmatprep.subr.bf16.mxu0 0
    %331 = vmatpush1.bf16.msra.mxu0 %v318
    %332 = vmatprep.subr.bf16.mxu0 0
    %333 = vmatpush1.bf16.msra.mxu0 %v319
    %334 = vmatprep.subr.bf16.mxu0 0
    %335 = vmatpush1.bf16.msra.mxu0 %v320
    %336 = vmatprep.subr.bf16.mxu0 0
    %337 = vmatpush1.bf16.msra.mxu0 %v321
    %338 = vmatprep.subr.bf16.mxu0 0
    %339 = vmatpush1.bf16.msra.mxu0 0
    %340 = vmatprep.subr.bf16.mxu0 0
    %341 = vmatpush1.bf16.msra.mxu0 0
    %342 = vmatprep.subr.bf16.mxu0 0
    %343 = vmatpush1.bf16.msra.mxu0 0
    %344 = vmatprep.subr.bf16.mxu0 0
    %345 = vmatpush1.bf16.msra.mxu0 0
    %346 = vmatprep.subr.bf16.mxu0 0
    %347 = vmatpush1.bf16.msra.mxu0 0
    %348 = vmatprep.subr.bf16.mxu0 0
    %349 = vmatpush1.bf16.msra.mxu0 0
    %350 = vmatprep.subr.bf16.mxu0 0
    %351 = vmatpush1.bf16.msra.mxu0 0
    %352 = vmatprep.subr.bf16.mxu0 0
    %353 = vmatpush1.bf16.msra.mxu0 0
    %354 = vmatprep.mubr.bf16.mxu0 0
    %355 = vmatmul.mubr.bf16.gmra.mrb[0].mxu0 %v297
    %v356 = vpop.f32.mrb[0].mxu0
    %v357 = vadd.f32 0.0, %v356
    %v358 = vpop.f32.mrb[0].mxu0
    %v359 = vpop.f32.mrb[0].mxu0
    %v360 = vpop.f32.mrb[0].mxu0
    %361 = vdwg.mxu0
    %v362 = vmul.f32 %v357, %v357
    %363 = vadd.xlane.f32.xlu0 %v362
    %v364 = vpop.xlane.xlu0 %363
    %v365 = vadd.f32 %v364, 1e-12
    %v366 = vrsqrt.pop %v365
    %v367 = vmul.f32 %v357, %v366
    %368 = vst [vmem:[#allocation14] sm:$0xff] %v239
    %369 = vst [vmem:[#allocation15] sm:$0xff] %v367
    %s370 = sld [smem:[#allocation2]]
    %v371 = vstv %s370
    %v372 = vmul.f32 %v239, %v371
    %v373 = vpack.c.bf16 %v372, %v372
    %v374 = vpack.c.bf16 %v367, %v367
    %375 = vmatprep.subr.bf16.mxu0 0
    %376 = vmatpush1.bf16.xpose.msra.mxu0 %v374
    %377 = vmatprep.subr.bf16.mxu0 0
    %378 = vmatpush1.bf16.xpose.msra.mxu0 0
    %379 = vmatprep.subr.bf16.mxu0 0
    %380 = vmatpush1.bf16.xpose.msra.mxu0 0
    %381 = vmatprep.subr.bf16.mxu0 0
    %382 = vmatpush1.bf16.xpose.msra.mxu0 0
    %383 = vmatprep.subr.bf16.mxu0 0
    %384 = vmatpush1.bf16.xpose.msra.mxu0 0
    %385 = vmatprep.subr.bf16.mxu0 0
    %386 = vmatpush1.bf16.xpose.msra.mxu0 0
    %387 = vmatprep.subr.bf16.mxu0 0
    %388 = vmatpush1.bf16.xpose.msra.mxu0 0
    %389 = vmatprep.subr.bf16.mxu0 0
    %390 = vmatpush1.bf16.xpose.msra.mxu0 0
    %391 = vmatprep.subr.bf16.mxu0 0
    %392 = vmatpush1.bf16.xpose.msra.mxu0 0
    %393 = vmatprep.subr.bf16.mxu0 0
    %394 = vmatpush1.bf16.xpose.msra.mxu0 0
    %395 = vmatprep.subr.bf16.mxu0 0
    %396 = vmatpush1.bf16.xpose.msra.mxu0 0
    %397 = vmatprep.subr.bf16.mxu0 0
    %398 = vmatpush1.bf16.xpose.msra.mxu0 0
    %399 = vmatprep.subr.bf16.mxu0 0
    %400 = vmatpush1.bf16.xpose.msra.mxu0 0
    %401 = vmatprep.subr.bf16.mxu0 0
    %402 = vmatpush1.bf16.xpose.msra.mxu0 0
    %403 = vmatprep.subr.bf16.mxu0 0
    %404 = vmatpush1.bf16.xpose.msra.mxu0 0
    %405 = vmatprep.subr.bf16.mxu0 0
    %406 = vmatpush1.bf16.xpose.msra.mxu0 0
    %407 = vmatprep.mubr.bf16.mxu0 0
    %408 = vmatmul.mubr.bf16.gmra.mrb[0].mxu0 %v373
    %v409 = vpop.f32.mrb[0].mxu0
    %v410 = vadd.f32 0.0, %v409
    %v411 = vpop.f32.mrb[0].mxu0
    %v412 = vpop.f32.mrb[0].mxu0
    %v413 = vpop.f32.mrb[0].mxu0
    %414 = vdwg.mxu0
    %vm415 = vcmask 64512
    %v416 = vsel %vm415, %v410, -inf
    %417 = vmax.xlane.f32.xlu0 %v416
    %v418 = vpop.xlane.xlu0 %417
    %v419 = vsub.f32 %v410, %v418
    %v420 = vmul.f32 %v419, 1.442695
    %v421 = vpow.pop %v420
    %v422 = vsel %vm415, %v421, 0.0
    %423 = vadd.xlane.f32.xlu0 %v422
    %v424 = vpop.xlane.xlu0 %423
    %v425 = vlog2.pop %v424
    %v426 = vmul.f32 %v425, 0.6931472
    %v427 = vadd.f32 %v418, %v426
    %v428 = vrot.slane %v416, 4
    %v429 = vmax.f32 %v416, %v428
    %v430 = vrot.slane %v429, 2
    %v431 = vmax.f32 %v429, %v430
    %v432 = vrot.slane %v431, 1
    %v433 = vmax.f32 %v431, %v432
    %v434 = vsub.f32 %v410, %v433
    %v435 = vmul.f32 %v434, 1.442695
    %v436 = vpow.pop %v435
    %v437 = vsel %vm415, %v436, 0.0
    %v438 = vrot.slane %v437, 4
    %v439 = vadd.f32 %v437, %v438
    %v440 = vrot.slane %v439, 2
    %v441 = vadd.f32 %v439, %v440
    %v442 = vrot.slane %v441, 1
    %v443 = vadd.f32 %v441, %v442
    %v444 = vlog2.pop %v443
    %v445 = vmul.f32 %v444, 0.6931472
    %v446 = vadd.f32 %v433, %v445
    %v447 = vmul.f32 %v372, %v367
    %448 = vadd.xlane.f32.xlu0 %v447
    %v449 = vpop.xlane.xlu0 %448
    %v450 = vrot.slane %v427, 4
    %v451 = vadd.f32 %v427, %v450
    %v452 = vrot.slane %v451, 2
    %v453 = vadd.f32 %v451, %v452
    %v454 = vrot.slane %v453, 1
    %v455 = vadd.f32 %v453, %v454
    %v456 = vsel %vm415, %v446, 0.0
    %457 = vadd.xlane.f32.xlu0 %v456
    %v458 = vpop.xlane.xlu0 %457
    %v459 = vadd.f32 %v455, %v458
    %v460 = vrot.slane %v449, 4
    %v461 = vadd.f32 %v449, %v460
    %v462 = vrot.slane %v461, 2
    %v463 = vadd.f32 %v461, %v462
    %v464 = vrot.slane %v463, 1
    %v465 = vadd.f32 %v463, %v464
    %v466 = vmul.f32 %v465, 2.0
    %v467 = vsub.f32 %v459, %v466
    %v468 = vmul.f32 %v467, 0.5
    %v469 = vmul.f32 %v468, 0.125
    %vm470 = vcmask 0
    %471 = vst.msk [vmem:[#allocation17] sm:$0x1] %vm470, %v469
    // Predicated region
    $region54: #{tpu_custom_call.1} parent=1 // pred_check
      _
    $region55: #{tpu_custom_call.1} parent=1 // pred_check_branch
      %473 = sbr.rel (0) target = $region57
    $region56: #{tpu_custom_call.1} parent=1 // pred_region
      %s475 = ssub.s32 128, 128
      %476 = vsyncadd [#allocation5], %s475
      %s478 = sshll.u32 [#allocation14], 4
      %s479 = int_to_ptr.vmem [resolvable:$true] %s478
      %481 = dma.vmem_to_hbm [thread:$0]  %s479, 128, %s7, [#allocation5]
    $region57: #{tpu_custom_call.1} parent=1 // pred_fallthru
      _
    // Predicated region
    $region58: #{tpu_custom_call.1} parent=1 // pred_check
      _
    $region59: #{tpu_custom_call.1} parent=1 // pred_check_branch
      %483 = sbr.rel (0) target = $region61
    $region60: #{tpu_custom_call.1} parent=1 // pred_region
      %s485 = ssub.s32 128, 128
      %486 = vsyncadd [#allocation16], %s485
      %s488 = sshll.u32 [#allocation15], 4
      %s489 = int_to_ptr.vmem [resolvable:$true] %s488
      %491 = dma.vmem_to_hbm [thread:$0]  %s489, 128, %s8, [#allocation16]
    $region61: #{tpu_custom_call.1} parent=1 // pred_fallthru
      _
    // Predicated region
    $region62: #{tpu_custom_call.1} parent=1 // pred_check
      _
    $region63: #{tpu_custom_call.1} parent=1 // pred_check_branch
      %493 = sbr.rel (0) target = $region65
    $region64: #{tpu_custom_call.1} parent=1 // pred_region
      %s495 = ssub.s32 16, 16
      %496 = vsyncadd [#allocation16], %s495
      %s498 = sshll.u32 [#allocation17], 4
      %s499 = int_to_ptr.vmem [resolvable:$true] %s498
      %501 = dma.vmem_to_hbm [thread:$0]  %s499, 16, %s9, [#allocation16]
    $region65: #{tpu_custom_call.1} parent=1 // pred_fallthru
      _
    // Predicated region
    $region66: #{tpu_custom_call.1} parent=1 // pred_check
      _
    $region67: #{tpu_custom_call.1} parent=1 // pred_check_branch
      %503 = sbr.rel (0) target = $region69
    $region68: #{tpu_custom_call.1} parent=1 // pred_region
      %504 = dma.done [#allocation5], 128
    $region69: #{tpu_custom_call.1} parent=1 // pred_fallthru
      _
    // Predicated region
    $region70: #{tpu_custom_call.1} parent=1 // pred_check
      _
    $region71: #{tpu_custom_call.1} parent=1 // pred_check_branch
      %506 = sbr.rel (0) target = $region73
    $region72: #{tpu_custom_call.1} parent=1 // pred_region
      %507 = dma.done [#allocation16], 128
    $region73: #{tpu_custom_call.1} parent=1 // pred_fallthru
      _
    // Predicated region
    $region74: #{tpu_custom_call.1} parent=1 // pred_check
      _
    $region75: #{tpu_custom_call.1} parent=1 // pred_check_branch
      %509 = sbr.rel (0) target = $region77
    $region76: #{tpu_custom_call.1} parent=1 // pred_region
      %510 = dma.done [#allocation16], 16
    $region77: #{tpu_custom_call.1} parent=1 // pred_fallthru
      _
    %511 = vsyncpa [#allocation4], 1
    %512 = vsyncpa [#allocation7], 1
    %513 = vsyncpa [#allocation10], 1
    %514 = vsyncpa [#allocation13], 1
    %515 = vsyncpa [#allocation5], 1
    %516 = vsyncpa [#allocation16], 1

</llo_original>
